<compile_context>
chip_gen: v7x
topology: tpu7x:2x2x1
jax: 0.10.0
libtpu: 0.0.40
codegen_flags: <defaults>
</compile_context>

<pallas_src>
import functools

import jax
import jax.numpy as jnp
from jax.experimental import pallas as pl
from jax.experimental.pallas import tpu as pltpu


# Total double-buffered VMEM footprint target. 12 MiB fits v5e's 16 MiB
# scoped-VMEM default and leaves pipelining headroom on v7x (64 MiB physical).
_VMEM_BUDGET_BYTES = 12 << 20


# ----------------------------- kernels --------------------------------------

def _residual_add_kernel(x_ref, fx_ref, o_ref):
    # out = x + f(x), with f(x) precomputed outside (arbitrary f).
    o_ref[...] = x_ref[...] + fx_ref[...]


def _residual_apply_kernel(x_ref, o_ref, *, f_tile):
    # out = x + f(x), with row-local f fused inside the kernel.
    x = x_ref[...]
    o_ref[...] = x + f_tile(x)


# ----------------------------- tiling helpers --------------------------------

def _round_up(v, m):
    return ((v + m - 1) // m) * m


def _pick_lane_width(n, *, cap=32768, min_rows=16):
    """Largest power-of-2 multiple of 128 that divides n (keeps >= min_rows rows).

    Returns None if n is not a multiple of 128 (caller falls back to (rows, D)).
    """
    if n % 128 != 0:
        return None
    lane = 128
    while (lane * 2 <= cap and n % (lane * 2) == 0
           and n // (lane * 2) >= min_rows):
        lane *= 2
    return lane


def _pick_row_tile(rows, lane, itemsize, n_arrays, *, min_blocks=2):
    """Row-tile height from the VMEM budget (n_arrays, each double-buffered)."""
    block_budget = _VMEM_BUDGET_BYTES // (2 * n_arrays)
    tm = max(8, (block_budget // max(1, lane * itemsize)) // 8 * 8)
    if rows > 8:
        # Keep at least `min_blocks` grid steps so the "parallel" grid axis
        # can shard across both v7x TensorCores (per-step overhead ~0.35us).
        tm = min(tm, _round_up(pl.cdiv(rows, min_blocks), 8))
    if tm >= rows:
        tm = rows  # full-extent block: legal for any row count
    return tm


# ----------------------------- wrappers -------------------------------------

def residual_add(x, fx, *, donate_x=True):
    """Pallas ResidualAdd: x + fx, where fx = f(x) was computed by plain JAX."""
    assert x.shape == fx.shape and x.dtype == fx.dtype
    orig_shape = x.shape
    itemsize = jnp.dtype(x.dtype).itemsize
    n = x.size

    # The add has no per-row semantics: use a lane-dense slab when possible so
    # stores are wide unmasked vst even when the hidden dim is not 128-aligned.
    lane = _pick_lane_width(n)
    if lane is None:
        lane = orig_shape[-1]  # fall back to (tokens, D) with full-D lane blocks
    rows = n // lane
    x2 = x.reshape(rows, lane)
    fx2 = fx.reshape(rows, lane)

    tm = _pick_row_tile(rows, lane, itemsize, n_arrays=3)
    grid = (pl.cdiv(rows, tm),)  # partial tail block is masked by Pallas

    out = pl.pallas_call(
        _residual_add_kernel,
        out_shape=jax.ShapeDtypeStruct((rows, lane), x.dtype),
        grid_spec=pltpu.PrefetchScalarGridSpec(
            num_scalar_prefetch=0,
            grid=grid,
            in_specs=[
                pl.BlockSpec((tm, lane), lambda i: (i, 0)),   # x
                pl.BlockSpec((tm, lane), lambda i: (i, 0)),   # f(x)
            ],
            out_specs=pl.BlockSpec((tm, lane), lambda i: (i, 0)),
        ),
        compiler_params=pltpu.CompilerParams(
            dimension_semantics=("parallel",)),
        cost_estimate=pl.CostEstimate(
            flops=n,
            transcendentals=0,
            bytes_accessed=3 * n * itemsize),
        input_output_aliases=({0: 0} if donate_x else {}),
    )(x2, fx2)

    return out.reshape(orig_shape)


def residual_add_fused(x, f_tile, *, donate_x=True,
                       flops_per_elem=2, transcendentals_per_elem=1):
    """Fused ResidualAdd: out = x + f_tile(x), with f traced inside the kernel.

    Contract: f_tile must be strictly row-local (elementwise / per-token), so
    applying it to a (tile_rows, D) block equals applying it to the full array.
    Rows past the end of the partial tail block hold garbage and are masked on
    store; this is only safe under that contract.
    """
    orig_shape = x.shape
    d = orig_shape[-1]
    itemsize = jnp.dtype(x.dtype).itemsize
    n = x.size

    x2 = x.reshape(-1, d)
    rows = x2.shape[0]

    tm = _pick_row_tile(rows, d, itemsize, n_arrays=2)
    grid = (pl.cdiv(rows, tm),)  # partial tail block is masked by Pallas

    kernel = functools.partial(_residual_apply_kernel, f_tile=f_tile)
    out = pl.pallas_call(
        kernel,
        out_shape=jax.ShapeDtypeStruct((rows, d), x.dtype),
        grid_spec=pltpu.PrefetchScalarGridSpec(
            num_scalar_prefetch=0,
            grid=grid,
            in_specs=[pl.BlockSpec((tm, d), lambda i: (i, 0))],
            out_specs=pl.BlockSpec((tm, d), lambda i: (i, 0)),
        ),
        compiler_params=pltpu.CompilerParams(
            dimension_semantics=("parallel",)),
        cost_estimate=pl.CostEstimate(
            flops=flops_per_elem * n,
            transcendentals=transcendentals_per_elem * n,
            bytes_accessed=2 * n * itemsize),
        input_output_aliases=({0: 0} if donate_x else {}),
    )(x2)

    return out.reshape(orig_shape)


# ----------------------------- demo / check ---------------------------------

if __name__ == "__main__":
    # Small shapes consistent with the ViT context: batch=2, seq=8, hidden=32.
    B, S, D = 2, 8, 32
    key = jax.random.PRNGKey(0)
    kx, kw = jax.random.split(key)
    x = jax.random.normal(kx, (B, S, D), dtype=jnp.float32)

    # (1) General path: f mixes tokens across the sequence axis (NOT row-local,
    #     like attention), so it is computed in plain JAX; the Pallas kernel
    #     fuses only the residual add.
    w_mix = jax.random.normal(kw, (S, S), dtype=jnp.float32) * 0.1

    def f_general(v):
        return jnp.einsum("bsd,st->btd", v, w_mix)

    fx = f_general(x)
    ref1 = x + fx
    out1 = jax.block_until_ready(residual_add(x, fx))
    assert out1.shape == x.shape, out1.shape
    assert jnp.allclose(out1, ref1, atol=1e-5, rtol=1e-5), "general path mismatch"

    # (2) Fused path: f is row-local (elementwise GELU), traced inside the
    #     kernel so f(x) never touches HBM.
    ref2 = x + jax.nn.gelu(x)
    out2 = jax.block_until_ready(residual_add_fused(x, jax.nn.gelu))
    assert jnp.allclose(out2, ref2, atol=1e-5, rtol=1e-5), "fused path mismatch"

    print("KERNEL_OK")
</pallas_src>

<mosaic_0001>
module attributes {stable_mosaic.version = 11 : i64} {
  func.func @_residual_add_kernel(%arg0: i32, %arg1: memref<4x128xf32, #tpu.memory_space<vmem>>, %arg2: memref<4x128xf32, #tpu.memory_space<vmem>>, %arg3: memref<4x128xf32, #tpu.memory_space<vmem>>) attributes {dimension_semantics = [#tpu.dimension_semantics<parallel>], iteration_bounds = array<i64: 1>, scalar_prefetch = 0 : i64, scratch_operands = 0 : i64, tpu.core_type = #tpu.core_type<tc>, window_params = [{transform_indices = @transform_0, window_bounds = array<i64: 4, 128>}, {transform_indices = @transform_1, window_bounds = array<i64: 4, 128>}, {transform_indices = @transform_2, window_bounds = array<i64: 4, 128>}]} {
    %c0 = arith.constant 0 : index
    %c0_0 = arith.constant 0 : index
    %0 = vector.load %arg1[%c0, %c0_0] : memref<4x128xf32, #tpu.memory_space<vmem>>, vector<4x128xf32>
    %c0_1 = arith.constant 0 : index
    %c0_2 = arith.constant 0 : index
    %1 = vector.load %arg2[%c0_1, %c0_2] : memref<4x128xf32, #tpu.memory_space<vmem>>, vector<4x128xf32>
    %2 = arith.addf %0, %1 : vector<4x128xf32>
    %c0_3 = arith.constant 0 : index
    %c0_4 = arith.constant 0 : index
    %3 = vector.load %arg3[%c0_3, %c0_4] : memref<4x128xf32, #tpu.memory_space<vmem>>, vector<4x128xf32>
    tpu.vector_store %arg3[%c0_3, %c0_4], %2 {strides = array<i32>} : memref<4x128xf32, #tpu.memory_space<vmem>>, vector<4x128xf32>,
    return
  }
  func.func @transform_0(%arg0: i32) -> (i32, i32) {
    %c0_i32 = arith.constant 0 : i32
    %c0_i32_0 = arith.constant 0 : i32
    return %arg0, %c0_i32 : i32, i32
  }
  func.func @transform_1(%arg0: i32) -> (i32, i32) {
    %c0_i32 = arith.constant 0 : i32
    %c0_i32_0 = arith.constant 0 : i32
    return %arg0, %c0_i32 : i32, i32
  }
  func.func @transform_2(%arg0: i32) -> (i32, i32) {
    %c0_i32 = arith.constant 0 : i32
    %c0_i32_0 = arith.constant 0 : i32
    return %arg0, %c0_i32 : i32, i32
  }
}

</mosaic_0001>

<llo_original>
// kernel: tpu_custom_call.1
$region0: #{tpu_custom_call.1}
  #allocation0 [shape = 'u32[]', space=smem, size = 0x4, offset = 0x4, fixed_abs, tag = 'smem constant byte address 0x4 - core index']
  #allocation1 [shape = 'u32[144,128]{1,0:T(1,128)}', space=vmem, size = 0x12000, scoped, tag = 'internal scratch']
  %s0 = inlined_call_operand.hbm [shape: f32[4,128], index: 0, kind: input, shape index: {}, may-alias: {0,2}]
  %s1 = inlined_call_operand.vmem [shape: f32[4,128], index: 1, kind: input, shape index: {}]
  %s2 = inlined_call_operand.hbm [shape: f32[4,128], index: 2, kind: output, shape index: {}, may-alias: {0,2}]
  %s3 = sld [smem:[#allocation0]]
  $region22: #{tpu_custom_call.1} parent=0
    _
  %s5 = ssub.s32 1, %s3
  %s6 = scalar_select 0, %s5, %s3
  $region1: #{tpu_custom_call.1} parent=0
    #allocation2 [shape = 'u8[2048]{0}', space=vmem, size = 0x800, scoped, tag = 'input window, operand 0, single buffered']
    #allocation3 [shape = 's32[1]{0}', space=sflag, size = 0x4, scoped, tag = 'scoped memory for tpu_custom_call.1']
    #allocation4 [shape = 's32[1]{0}', space=sflag, size = 0x4, scoped, tag = 'scoped memory for tpu_custom_call.1']
    #allocation5 [shape = 'u8[2048]{0}', space=vmem, size = 0x800, scoped, tag = 'output window, operand 0, single buffered']
    %7 = vsyncpa [#allocation3], 0
    %8 = vsyncpa [#allocation4], 0
    // Predicated region
    $region2: #{tpu_custom_call.1} parent=1 // pred_check
      _
    $region3: #{tpu_custom_call.1} parent=1 // pred_check_branch
      %10 = sbr.rel (0) target = $region5
    $region4: #{tpu_custom_call.1} parent=1 // pred_region
      %s12 = ssub.s32 64, 64
      %13 = vsyncadd [#allocation3], %s12
      %s15 = sshll.u32 [#allocation2], 4
      %s16 = int_to_ptr.vmem [resolvable:$true] %s15
      %18 = dma.hbm_to_vmem [thread:$0]  %s0, 64, %s16, [#allocation3]
    $region5: #{tpu_custom_call.1} parent=1 // pred_fallthru
      _
    // Predicated region
    $region6: #{tpu_custom_call.1} parent=1 // pred_check
      _
    $region7: #{tpu_custom_call.1} parent=1 // pred_check_branch
      %20 = sbr.rel (0) target = $region9
    $region8: #{tpu_custom_call.1} parent=1 // pred_region
      _
    $region9: #{tpu_custom_call.1} parent=1 // pred_fallthru
      _
    // Predicated region
    $region10: #{tpu_custom_call.1} parent=1 // pred_check
      _
    $region11: #{tpu_custom_call.1} parent=1 // pred_check_branch
      %22 = sbr.rel (0) target = $region13
    $region12: #{tpu_custom_call.1} parent=1 // pred_region
      %23 = dma.done [#allocation3], 64
    $region13: #{tpu_custom_call.1} parent=1 // pred_fallthru
      _
    %v24 = vld [vmem:[#allocation2] sm:$0xf]
    %v25 = vld [vmem:[%s1] sm:$0xf]
    %v26 = vadd.f32 %v24, %v25
    %27 = vst [vmem:[#allocation5] sm:$0xf] %v26
    // Predicated region
    $region14: #{tpu_custom_call.1} parent=1 // pred_check
      _
    $region15: #{tpu_custom_call.1} parent=1 // pred_check_branch
      %29 = sbr.rel (0) target = $region17
    $region16: #{tpu_custom_call.1} parent=1 // pred_region
      %s31 = ssub.s32 64, 64
      %32 = vsyncadd [#allocation4], %s31
      %s34 = sshll.u32 [#allocation5], 4
      %s35 = int_to_ptr.vmem [resolvable:$true] %s34
      %37 = dma.vmem_to_hbm [thread:$0]  %s35, 64, %s2, [#allocation4]
    $region17: #{tpu_custom_call.1} parent=1 // pred_fallthru
      _
    // Predicated region
    $region18: #{tpu_custom_call.1} parent=1 // pred_check
      _
    $region19: #{tpu_custom_call.1} parent=1 // pred_check_branch
      %39 = sbr.rel (0) target = $region21
    $region20: #{tpu_custom_call.1} parent=1 // pred_region
      %40 = dma.done [#allocation4], 64
    $region21: #{tpu_custom_call.1} parent=1 // pred_fallthru
      _
    %41 = vsyncpa [#allocation3], 1
    %42 = vsyncpa [#allocation4], 1

</llo_original>
